<compile_context>
chip_gen: v7x
topology: tpu7x:2x2x1
jax: 0.10.0
libtpu: 0.0.40
codegen_flags: <defaults>
</compile_context>

<pallas_src>
import functools

import jax
import jax.numpy as jnp
from jax.experimental import pallas as pl
from jax.experimental.pallas import tpu as pltpu


def _cnn_kernel(x_ref, w_ref, b_ref, o_ref, *, k, padding, l_out, l_out_pad):
    # x_ref: (TILE_N, L, e_char)   bf16
    # w_ref: (k*e_char, e_word)    bf16
    # b_ref: (1, e_word)           f32
    # o_ref: (TILE_N, e_word)      f32
    x = x_ref[...]
    tile_n, L, e_char = x.shape
    e_word = w_ref.shape[1]

    # Zero-pad the length axis in VMEM: `padding` on the left, enough on the
    # right so every tap slice of length l_out_pad is in-bounds.
    left = padding
    right = (l_out_pad + k - 1) - (L + padding)
    pieces = []
    if left > 0:
        pieces.append(jnp.zeros((tile_n, left, e_char), dtype=x.dtype))
    pieces.append(x)
    if right > 0:
        pieces.append(jnp.zeros((tile_n, right, e_char), dtype=x.dtype))
    x_pad = jnp.concatenate(pieces, axis=1) if len(pieces) > 1 else x

    # im2col: column order (tap j, channel c) -> j*e_char + c, matching w_ref.
    x_unf = jnp.concatenate(
        [x_pad[:, j:j + l_out_pad, :] for j in range(k)], axis=-1)
    x_unf = x_unf.reshape(tile_n * l_out_pad, k * e_char)

    # Single MXU matmul, f32 accumulation.
    y = jnp.dot(x_unf, w_ref[...], preferred_element_type=jnp.float32)
    y = y.reshape(tile_n, l_out_pad, e_word)

    # Max-pool over the real output positions only, then bias + ReLU once.
    m = jnp.max(y[:, :l_out, :], axis=1)                    # (TILE_N, e_word)
    o_ref[...] = jnp.maximum(m + b_ref[...], 0.0).astype(o_ref.dtype)


def _round_up(v, m):
    return (v + m - 1) // m * m


def _pick_tile_n(n, target=1024):
    """Largest tile <= target that divides n (multiple of 8 when actually tiling)."""
    if n <= target:
        return n
    t = (target // 8) * 8
    while t >= 8:
        if n % t == 0:
            return t
        t -= 8
    return n


def cnn_forward(x, weight, bias, *, k=5, padding=1):
    """x: (sent_len, bs, e_char, L); weight: (e_word, e_char, k); bias: (e_word,)."""
    sent_len, bs, e_char, L = x.shape
    e_word = weight.shape[0]
    N = sent_len * bs

    l_out = L + 2 * padding - k + 1
    assert l_out >= 1, "need L + 2*padding >= k"
    l_out_pad = _round_up(l_out, 8)

    # Layout prep (one fused XLA copy): (N, L, e_char) in bf16 for the MXU.
    x2 = jnp.transpose(x.reshape(N, e_char, L), (0, 2, 1)).astype(jnp.bfloat16)
    # Weights: (e_word, e_char, k) -> (k, e_char, e_word) -> (k*e_char, e_word).
    w_t = jnp.transpose(weight, (2, 1, 0)).reshape(k * e_char, e_word)
    w_t = w_t.astype(jnp.bfloat16)
    b_t = bias.reshape(1, e_word).astype(jnp.float32)

    tile_n = _pick_tile_n(N)
    assert N % tile_n == 0
    grid = (N // tile_n,)

    out = pl.pallas_call(
        functools.partial(_cnn_kernel, k=k, padding=padding,
                          l_out=l_out, l_out_pad=l_out_pad),
        grid=grid,
        in_specs=[
            pl.BlockSpec((tile_n, L, e_char), lambda i: (i, 0, 0)),
            pl.BlockSpec((k * e_char, e_word), lambda i: (0, 0)),
            pl.BlockSpec((1, e_word), lambda i: (0, 0)),
        ],
        out_specs=pl.BlockSpec((tile_n, e_word), lambda i: (i, 0)),
        out_shape=jax.ShapeDtypeStruct((N, e_word), jnp.float32),
        compiler_params=pltpu.CompilerParams(
            dimension_semantics=("parallel",),
            vmem_limit_bytes=32 * 1024 * 1024,
        ),
    )(x2, w_t, b_t)

    return out.reshape(sent_len, bs, e_word)


def _reference(x, weight, bias, *, k=5, padding=1):
    """Pure-JAX f32 reference mirroring the PyTorch module."""
    sent_len, bs, e_char, L = x.shape
    e_word = weight.shape[0]
    x2 = x.reshape(sent_len * bs, e_char, L)
    y = jax.lax.conv_general_dilated(
        x2, weight, window_strides=(1,), padding=[(padding, padding)],
        dimension_numbers=("NCH", "OIH", "NCH"))
    y = y + bias[None, :, None]
    y = jnp.maximum(y, 0.0)
    y = jnp.max(y, axis=-1)
    return y.reshape(sent_len, bs, e_word)


if __name__ == "__main__":
    # Small deterministic shapes consistent with the module.
    sent_len, bs, e_char, max_word_len = 4, 2, 8, 16
    e_word, k, padding = 32, 5, 1

    key = jax.random.PRNGKey(0)
    kx, kw, kb = jax.random.split(key, 3)

    x = jax.random.normal(kx, (sent_len, bs, e_char, max_word_len), jnp.float32)
    # Deterministic "PyTorch-like" init: uniform(-b, b), b = 1/sqrt(e_char*k).
    bound = 1.0 / jnp.sqrt(jnp.float32(e_char * k))
    weight = jax.random.uniform(kw, (e_word, e_char, k), jnp.float32, -bound, bound)
    bias = jax.random.uniform(kb, (e_word,), jnp.float32, -bound, bound)

    out = cnn_forward(x, weight, bias, k=k, padding=padding)
    out = jax.block_until_ready(out)

    ref = _reference(x, weight, bias, k=k, padding=padding)
    assert out.shape == (sent_len, bs, e_word)
    # bf16 inputs (f32 accumulate) vs. f32 reference -> relaxed tolerance.
    assert jnp.allclose(out, ref, atol=2.5e-2, rtol=2.5e-2), \
        float(jnp.max(jnp.abs(out - ref)))

    print("KERNEL_OK")
</pallas_src>

<mosaic_0001>
module attributes {stable_mosaic.version = 11 : i64} {
  func.func @_cnn_kernel(%arg0: i32, %arg1: memref<8x16x8xbf16, #tpu.memory_space<vmem>>, %arg2: memref<40x32xbf16, #tpu.memory_space<vmem>>, %arg3: memref<1x32xf32, #tpu.memory_space<vmem>>, %arg4: memref<8x32xf32, #tpu.memory_space<vmem>>) attributes {dimension_semantics = [#tpu.dimension_semantics<parallel>], iteration_bounds = array<i64: 1>, scalar_prefetch = 0 : i64, scratch_operands = 0 : i64, tpu.core_type = #tpu.core_type<tc>, window_params = [{transform_indices = @transform_0, window_bounds = array<i64: 8, 16, 8>}, {pipeline_mode = #tpu.pipeline_mode<synchronous>, transform_indices = @transform_1, window_bounds = array<i64: 40, 32>}, {pipeline_mode = #tpu.pipeline_mode<synchronous>, transform_indices = @transform_2, window_bounds = array<i64: 1, 32>}, {transform_indices = @transform_3, window_bounds = array<i64: 8, 32>}]} {
    %c0 = arith.constant 0 : index
    %c0_0 = arith.constant 0 : index
    %c0_1 = arith.constant 0 : index
    %0 = vector.load %arg1[%c0, %c0_0, %c0_1] : memref<8x16x8xbf16, #tpu.memory_space<vmem>>, vector<8x16x8xbf16>
    %cst = arith.constant 0.000000e+00 : bf16
    %1 = vector.broadcast %cst : bf16 to vector<8x1x8xbf16>
    %cst_2 = arith.constant 0.000000e+00 : bf16
    %2 = vector.broadcast %cst_2 : bf16 to vector<8x3x8xbf16>
    %3 = tpu.concatenate %1, %0, %2 in 1 : vector<8x1x8xbf16>, vector<8x16x8xbf16>, vector<8x3x8xbf16> -> vector<8x20x8xbf16>
    %4 = vector.extract_strided_slice %3 {offsets = [0, 0, 0], sizes = [8, 16, 8], strides = [1, 1, 1]} : vector<8x20x8xbf16> to vector<8x16x8xbf16>
    %5 = vector.extract_strided_slice %3 {offsets = [0, 1, 0], sizes = [8, 16, 8], strides = [1, 1, 1]} : vector<8x20x8xbf16> to vector<8x16x8xbf16>
    %6 = vector.extract_strided_slice %3 {offsets = [0, 2, 0], sizes = [8, 16, 8], strides = [1, 1, 1]} : vector<8x20x8xbf16> to vector<8x16x8xbf16>
    %7 = vector.extract_strided_slice %3 {offsets = [0, 3, 0], sizes = [8, 16, 8], strides = [1, 1, 1]} : vector<8x20x8xbf16> to vector<8x16x8xbf16>
    %8 = vector.extract_strided_slice %3 {offsets = [0, 4, 0], sizes = [8, 16, 8], strides = [1, 1, 1]} : vector<8x20x8xbf16> to vector<8x16x8xbf16>
    %9 = tpu.concatenate %4, %5, %6, %7, %8 in 2 : vector<8x16x8xbf16>, vector<8x16x8xbf16>, vector<8x16x8xbf16>, vector<8x16x8xbf16>, vector<8x16x8xbf16> -> vector<8x16x40xbf16>
    %10 = vector.shape_cast %9 : vector<8x16x40xbf16> to vector<128x40xbf16>
    %c0_3 = arith.constant 0 : index
    %c0_4 = arith.constant 0 : index
    %11 = vector.load %arg2[%c0_3, %c0_4] : memref<40x32xbf16, #tpu.memory_space<vmem>>, vector<40x32xbf16>
    %cst_5 = arith.constant dense<0.000000e+00> : vector<128x32xf32>
    %12 = tpu.matmul %10, %11, %cst_5 {dimension_numbers = #tpu.dot_dimension_numbers<[1], [0], [0], [1], [0, 0, 1, 1], [], []>} : vector<128x40xbf16>, vector<40x32xbf16>, vector<128x32xf32> -> vector<128x32xf32>
    %13 = vector.shape_cast %12 : vector<128x32xf32> to vector<8x16x32xf32>
    %14 = vector.extract_strided_slice %13 {offsets = [0, 0, 0], sizes = [8, 14, 32], strides = [1, 1, 1]} : vector<8x16x32xf32> to vector<8x14x32xf32>
    %cst_6 = arith.constant dense<0xFF800000> : vector<8x32xf32>
    %15 = vector.multi_reduction <maximumf>, %14, %cst_6 [1] : vector<8x14x32xf32> to vector<8x32xf32>
    %c0_7 = arith.constant 0 : index
    %c0_8 = arith.constant 0 : index
    %16 = vector.load %arg3[%c0_7, %c0_8] : memref<1x32xf32, #tpu.memory_space<vmem>>, vector<1x32xf32>
    %17 = vector.broadcast %16 : vector<1x32xf32> to vector<8x32xf32>
    %18 = arith.addf %15, %17 : vector<8x32xf32>
    %cst_9 = arith.constant 0.000000e+00 : f32
    %19 = vector.broadcast %cst_9 : f32 to vector<8x32xf32>
    %20 = arith.maximumf %18, %19 : vector<8x32xf32>
    %c0_10 = arith.constant 0 : index
    %c0_11 = arith.constant 0 : index
    %21 = vector.load %arg4[%c0_10, %c0_11] : memref<8x32xf32, #tpu.memory_space<vmem>>, vector<8x32xf32>
    tpu.vector_store %arg4[%c0_10, %c0_11], %20 {strides = array<i32>} : memref<8x32xf32, #tpu.memory_space<vmem>>, vector<8x32xf32>,
    return
  }
  func.func @transform_0(%arg0: i32) -> (i32, i32, i32) {
    %c0_i32 = arith.constant 0 : i32
    %c0_i32_0 = arith.constant 0 : i32
    %c0_i32_1 = arith.constant 0 : i32
    return %arg0, %c0_i32, %c0_i32_0 : i32, i32, i32
  }
  func.func @transform_1(%arg0: i32) -> (i32, i32) {
    %c0_i32 = arith.constant 0 : i32
    %c0_i32_0 = arith.constant 0 : i32
    %c0_i32_1 = arith.constant 0 : i32
    return %c0_i32, %c0_i32_0 : i32, i32
  }
  func.func @transform_2(%arg0: i32) -> (i32, i32) {
    %c0_i32 = arith.constant 0 : i32
    %c0_i32_0 = arith.constant 0 : i32
    %c0_i32_1 = arith.constant 0 : i32
    return %c0_i32, %c0_i32_0 : i32, i32
  }
  func.func @transform_3(%arg0: i32) -> (i32, i32) {
    %c0_i32 = arith.constant 0 : i32
    %c0_i32_0 = arith.constant 0 : i32
    return %arg0, %c0_i32 : i32, i32
  }
}

</mosaic_0001>

<llo_original>
// kernel: tpu_custom_call.1
$region0: #{tpu_custom_call.1}
  #allocation0 [shape = 'u32[]', space=smem, size = 0x4, offset = 0x4, fixed_abs, tag = 'smem constant byte address 0x4 - core index']
  #allocation1 [shape = 'u32[144,128]{1,0:T(1,128)}', space=vmem, size = 0x12000, scoped, tag = 'internal scratch']
  %s0 = inlined_call_operand.vmem [shape: bf16[8,16,8], index: 0, kind: input, shape index: {}]
  %s1 = inlined_call_operand.vmem [shape: bf16[40,32], index: 1, kind: input, shape index: {}]
  %s2 = inlined_call_operand.vmem [shape: f32[1,32], index: 2, kind: input, shape index: {}]
  %s3 = inlined_call_operand.hbm [shape: f32[8,32], index: 3, kind: output, shape index: {}]
  %s4 = sld [smem:[#allocation0]]
  $region22: #{tpu_custom_call.1} parent=0
    _
  %s6 = ssub.s32 1, %s4
  %s7 = scalar_select 0, %s6, %s4
  $region1: #{tpu_custom_call.1} parent=0
    #allocation2 [shape = 'u8[4096]{0}', space=vmem, size = 0x1000, scoped, tag = 'output window, operand 0, single buffered']
    #allocation3 [shape = 's32[1]{0}', space=sflag, size = 0x4, scoped, tag = 'scoped memory for tpu_custom_call.1']
    %8 = vsyncpa [#allocation3], 0
    // Predicated region
    $region2: #{tpu_custom_call.1} parent=1 // pred_check
      _
    $region3: #{tpu_custom_call.1} parent=1 // pred_check_branch
      %10 = sbr.rel (0) target = $region5
    $region4: #{tpu_custom_call.1} parent=1 // pred_region
      _
    $region5: #{tpu_custom_call.1} parent=1 // pred_fallthru
      _
    // Predicated region
    $region6: #{tpu_custom_call.1} parent=1 // pred_check
      _
    $region7: #{tpu_custom_call.1} parent=1 // pred_check_branch
      %12 = sbr.rel (0) target = $region9
    $region8: #{tpu_custom_call.1} parent=1 // pred_region
      _
    $region9: #{tpu_custom_call.1} parent=1 // pred_fallthru
      _
    // Predicated region
    $region10: #{tpu_custom_call.1} parent=1 // pred_check
      _
    $region11: #{tpu_custom_call.1} parent=1 // pred_check_branch
      %14 = sbr.rel (0) target = $region13
    $region12: #{tpu_custom_call.1} parent=1 // pred_region
      _
    $region13: #{tpu_custom_call.1} parent=1 // pred_fallthru
      _
    %v16 = vld [vmem:[%s0] sm:$0xf]
    %v17 = vld [vmem:[%s0 + $0x4] sm:$0xf]
    %v18 = vld [vmem:[%s0 + $0x8] sm:$0xf]
    %v19 = vld [vmem:[%s0 + $0xc] sm:$0xf]
    %v20 = vld [vmem:[%s0 + $0x10] sm:$0xf]
    %v21 = vld [vmem:[%s0 + $0x14] sm:$0xf]
    %v22 = vld [vmem:[%s0 + $0x18] sm:$0xf]
    %v23 = vld [vmem:[%s0 + $0x1c] sm:$0xf]
    %v24 = vld [vmem:[%s0 + $0x20] sm:$0xf]
    %v25 = vld [vmem:[%s0 + $0x24] sm:$0xf]
    %v26 = vld [vmem:[%s0 + $0x28] sm:$0xf]
    %v27 = vld [vmem:[%s0 + $0x2c] sm:$0xf]
    %v28 = vld [vmem:[%s0 + $0x30] sm:$0xf]
    %v29 = vld [vmem:[%s0 + $0x34] sm:$0xf]
    %v30 = vld [vmem:[%s0 + $0x38] sm:$0xf]
    %v31 = vld [vmem:[%s0 + $0x3c] sm:$0xf]
    %v48 = vunpack.c.l.b16 %v16
    %v49 = vunpack.c.l.b16 %v17
    %v50 = vunpack.c.l.b16 %v18
    %v51 = vunpack.c.l.b16 %v19
    %v52 = vunpack.c.l.b16 %v20
    %v53 = vunpack.c.l.b16 %v21
    %v54 = vunpack.c.l.b16 %v22
    %v55 = vunpack.c.l.b16 %v23
    %v56 = vunpack.c.l.b16 %v24
    %v57 = vunpack.c.l.b16 %v25
    %v58 = vunpack.c.l.b16 %v26
    %v59 = vunpack.c.l.b16 %v27
    %v60 = vunpack.c.l.b16 %v28
    %v61 = vunpack.c.l.b16 %v29
    %v62 = vunpack.c.l.b16 %v30
    %v63 = vunpack.c.l.b16 %v31
    %v64 = vpack.c.b16 %v49, %v48
    %v65 = vpack.c.b16 %v51, %v50
    %v66 = vpack.c.b16 %v53, %v52
    %v67 = vpack.c.b16 %v55, %v54
    %v68 = vpack.c.b16 %v57, %v56
    %v69 = vpack.c.b16 %v59, %v58
    %v70 = vpack.c.b16 %v61, %v60
    %v71 = vpack.c.b16 %v63, %v62
    %v73 = vshrl.u32 %v64, 16
    %v75 = vrot.slane %v73, 7
    %v76 = vshll.u32 %v64, 16
    %v78 = vor.u32 %v75, %v76
    %v80 = vshrl.u32 %v65, 16
    %v82 = vrot.slane %v80, 7
    %v83 = vshll.u32 %v65, 16
    %v85 = vor.u32 %v82, %v83
    %v87 = vshrl.u32 %v66, 16
    %v89 = vrot.slane %v87, 7
    %v90 = vshll.u32 %v66, 16
    %v92 = vor.u32 %v89, %v90
    %v94 = vshrl.u32 %v67, 16
    %v96 = vrot.slane %v94, 7
    %v97 = vshll.u32 %v67, 16
    %v99 = vor.u32 %v96, %v97
    %v101 = vshrl.u32 %v68, 16
    %v103 = vrot.slane %v101, 7
    %v104 = vshll.u32 %v68, 16
    %v106 = vor.u32 %v103, %v104
    %v108 = vshrl.u32 %v69, 16
    %v110 = vrot.slane %v108, 7
    %v111 = vshll.u32 %v69, 16
    %v113 = vor.u32 %v110, %v111
    %v115 = vshrl.u32 %v70, 16
    %v117 = vrot.slane %v115, 7
    %v118 = vshll.u32 %v70, 16
    %v120 = vor.u32 %v117, %v118
    %v122 = vshrl.u32 %v71, 16
    %v124 = vrot.slane %v122, 7
    %v125 = vshll.u32 %v71, 16
    %v127 = vor.u32 %v124, %v125
    %vm144 = vcmask 1040384
    %vm145 = vsmask.f32 256
    %vm146 = vmand %vm144, %vm145
    %v147 = vsel %vm146, 0, %v78
    %v148 = vsel %vm146, 0, %v85
    %v149 = vsel %vm146, 0, %v92
    %v150 = vsel %vm146, 0, %v99
    %v151 = vsel %vm146, 0, %v106
    %v152 = vsel %vm146, 0, %v113
    %v153 = vsel %vm146, 0, %v120
    %v154 = vsel %vm146, 0, %v127
    %v155 = vsel %vm146, %v75, 0
    %v156 = vsel %vm146, %v82, 0
    %v157 = vsel %vm146, %v89, 0
    %v158 = vsel %vm146, %v96, 0
    %v159 = vsel %vm146, %v103, 0
    %v160 = vsel %vm146, %v110, 0
    %v161 = vsel %vm146, %v117, 0
    %v162 = vsel %vm146, %v124, 0
    %vm163 = vsmask.f32 7424
    %v165 = vshrl.u32 %v147, 16
    %v167 = vshll.u32 %v147, 16
    %v169 = vrot.slane %v167, 1
    %v170 = vor.u32 %v165, %v169
    %v172 = vshll.u32 %v155, 16
    %v174 = vrot.slane %v172, 1
    %v175 = vsel %vm163, %v170, %v174
    %v177 = vshrl.u32 %v148, 16
    %v179 = vshll.u32 %v148, 16
    %v181 = vrot.slane %v179, 1
    %v182 = vor.u32 %v177, %v181
    %v184 = vshll.u32 %v156, 16
    %v186 = vrot.slane %v184, 1
    %v187 = vsel %vm163, %v182, %v186
    %v189 = vshrl.u32 %v149, 16
    %v191 = vshll.u32 %v149, 16
    %v193 = vrot.slane %v191, 1
    %v194 = vor.u32 %v189, %v193
    %v196 = vshll.u32 %v157, 16
    %v198 = vrot.slane %v196, 1
    %v199 = vsel %vm163, %v194, %v198
    %v201 = vshrl.u32 %v150, 16
    %v203 = vshll.u32 %v150, 16
    %v205 = vrot.slane %v203, 1
    %v206 = vor.u32 %v201, %v205
    %v208 = vshll.u32 %v158, 16
    %v210 = vrot.slane %v208, 1
    %v211 = vsel %vm163, %v206, %v210
    %v213 = vshrl.u32 %v151, 16
    %v215 = vshll.u32 %v151, 16
    %v217 = vrot.slane %v215, 1
    %v218 = vor.u32 %v213, %v217
    %v220 = vshll.u32 %v159, 16
    %v222 = vrot.slane %v220, 1
    %v223 = vsel %vm163, %v218, %v222
    %v225 = vshrl.u32 %v152, 16
    %v227 = vshll.u32 %v152, 16
    %v229 = vrot.slane %v227, 1
    %v230 = vor.u32 %v225, %v229
    %v232 = vshll.u32 %v160, 16
    %v234 = vrot.slane %v232, 1
    %v235 = vsel %vm163, %v230, %v234
    %v237 = vshrl.u32 %v153, 16
    %v239 = vshll.u32 %v153, 16
    %v241 = vrot.slane %v239, 1
    %v242 = vor.u32 %v237, %v241
    %v244 = vshll.u32 %v161, 16
    %v246 = vrot.slane %v244, 1
    %v247 = vsel %vm163, %v242, %v246
    %v249 = vshrl.u32 %v154, 16
    %v251 = vshll.u32 %v154, 16
    %v253 = vrot.slane %v251, 1
    %v254 = vor.u32 %v249, %v253
    %v256 = vshll.u32 %v162, 16
    %v258 = vrot.slane %v256, 1
    %v259 = vsel %vm163, %v254, %v258
    %260 = vrot.lane.b32.xlu0 %v175, 8
    %v261 = vpop.permute.xlu0 %260
    %262 = vrot.lane.b32.xlu0 %v187, 8
    %v263 = vpop.permute.xlu0 %262
    %264 = vrot.lane.b32.xlu0 %v199, 8
    %v265 = vpop.permute.xlu0 %264
    %266 = vrot.lane.b32.xlu0 %v211, 8
    %v267 = vpop.permute.xlu0 %266
    %268 = vrot.lane.b32.xlu0 %v223, 8
    %v269 = vpop.permute.xlu0 %268
    %270 = vrot.lane.b32.xlu0 %v235, 8
    %v271 = vpop.permute.xlu0 %270
    %272 = vrot.lane.b32.xlu0 %v247, 8
    %v273 = vpop.permute.xlu0 %272
    %274 = vrot.lane.b32.xlu0 %v259, 8
    %v275 = vpop.permute.xlu0 %274
    %vm292 = vcmask 1046528
    %v293 = vrot.slane %v147, 1
    %v294 = vrot.slane %v155, 1
    %v295 = vsel %vm292, %v293, %v294
    %v296 = vrot.slane %v148, 1
    %v297 = vrot.slane %v156, 1
    %v298 = vsel %vm292, %v296, %v297
    %v299 = vrot.slane %v149, 1
    %v300 = vrot.slane %v157, 1
    %v301 = vsel %vm292, %v299, %v300
    %v302 = vrot.slane %v150, 1
    %v303 = vrot.slane %v158, 1
    %v304 = vsel %vm292, %v302, %v303
    %v305 = vrot.slane %v151, 1
    %v306 = vrot.slane %v159, 1
    %v307 = vsel %vm292, %v305, %v306
    %v308 = vrot.slane %v152, 1
    %v309 = vrot.slane %v160, 1
    %v310 = vsel %vm292, %v308, %v309
    %v311 = vrot.slane %v153, 1
    %v312 = vrot.slane %v161, 1
    %v313 = vsel %vm292, %v311, %v312
    %v314 = vrot.slane %v154, 1
    %v315 = vrot.slane %v162, 1
    %v316 = vsel %vm292, %v314, %v315
    %317 = vrot.lane.b32.xlu0 %v295, 16
    %v318 = vpop.permute.xlu0 %317
    %319 = vrot.lane.b32.xlu0 %v298, 16
    %v320 = vpop.permute.xlu0 %319
    %321 = vrot.lane.b32.xlu0 %v301, 16
    %v322 = vpop.permute.xlu0 %321
    %323 = vrot.lane.b32.xlu0 %v304, 16
    %v324 = vpop.permute.xlu0 %323
    %325 = vrot.lane.b32.xlu0 %v307, 16
    %v326 = vpop.permute.xlu0 %325
    %327 = vrot.lane.b32.xlu0 %v310, 16
    %v328 = vpop.permute.xlu0 %327
    %329 = vrot.lane.b32.xlu0 %v313, 16
    %v330 = vpop.permute.xlu0 %329
    %331 = vrot.lane.b32.xlu0 %v316, 16
    %v332 = vpop.permute.xlu0 %331
    %vm333 = vsmask.f32 6400
    %v334 = vrot.slane %v165, 1
    %v335 = vrot.slane %v167, 2
    %v336 = vor.u32 %v334, %v335
    %v337 = vshrl.u32 %v155, 16
    %v339 = vrot.slane %v337, 1
    %v340 = vrot.slane %v172, 2
    %v341 = vor.u32 %v339, %v340
    %v342 = vsel %vm333, %v336, %v341
    %v343 = vrot.slane %v177, 1
    %v344 = vrot.slane %v179, 2
    %v345 = vor.u32 %v343, %v344
    %v346 = vshrl.u32 %v156, 16
    %v348 = vrot.slane %v346, 1
    %v349 = vrot.slane %v184, 2
    %v350 = vor.u32 %v348, %v349
    %v351 = vsel %vm333, %v345, %v350
    %v352 = vrot.slane %v189, 1
    %v353 = vrot.slane %v191, 2
    %v354 = vor.u32 %v352, %v353
    %v355 = vshrl.u32 %v157, 16
    %v357 = vrot.slane %v355, 1
    %v358 = vrot.slane %v196, 2
    %v359 = vor.u32 %v357, %v358
    %v360 = vsel %vm333, %v354, %v359
    %v361 = vrot.slane %v201, 1
    %v362 = vrot.slane %v203, 2
    %v363 = vor.u32 %v361, %v362
    %v364 = vshrl.u32 %v158, 16
    %v366 = vrot.slane %v364, 1
    %v367 = vrot.slane %v208, 2
    %v368 = vor.u32 %v366, %v367
    %v369 = vsel %vm333, %v363, %v368
    %v370 = vrot.slane %v213, 1
    %v371 = vrot.slane %v215, 2
    %v372 = vor.u32 %v370, %v371
    %v373 = vshrl.u32 %v159, 16
    %v375 = vrot.slane %v373, 1
    %v376 = vrot.slane %v220, 2
    %v377 = vor.u32 %v375, %v376
    %v378 = vsel %vm333, %v372, %v377
    %v379 = vrot.slane %v225, 1
    %v380 = vrot.slane %v227, 2
    %v381 = vor.u32 %v379, %v380
    %v382 = vshrl.u32 %v160, 16
    %v384 = vrot.slane %v382, 1
    %v385 = vrot.slane %v232, 2
    %v386 = vor.u32 %v384, %v385
    %v387 = vsel %vm333, %v381, %v386
    %v388 = vrot.slane %v237, 1
    %v389 = vrot.slane %v239, 2
    %v390 = vor.u32 %v388, %v389
    %v391 = vshrl.u32 %v161, 16
    %v393 = vrot.slane %v391, 1
    %v394 = vrot.slane %v244, 2
    %v395 = vor.u32 %v393, %v394
    %v396 = vsel %vm333, %v390, %v395
    %v397 = vrot.slane %v249, 1
    %v398 = vrot.slane %v251, 2
    %v399 = vor.u32 %v397, %v398
    %v400 = vshrl.u32 %v162, 16
    %v402 = vrot.slane %v400, 1
    %v403 = vrot.slane %v256, 2
    %v404 = vor.u32 %v402, %v403
    %v405 = vsel %vm333, %v399, %v404
    %406 = vrot.lane.b32.xlu0 %v342, 24
    %v407 = vpop.permute.xlu0 %406
    %408 = vrot.lane.b32.xlu0 %v351, 24
    %v409 = vpop.permute.xlu0 %408
    %410 = vrot.lane.b32.xlu0 %v360, 24
    %v411 = vpop.permute.xlu0 %410
    %412 = vrot.lane.b32.xlu0 %v369, 24
    %v413 = vpop.permute.xlu0 %412
    %414 = vrot.lane.b32.xlu0 %v378, 24
    %v415 = vpop.permute.xlu0 %414
    %416 = vrot.lane.b32.xlu0 %v387, 24
    %v417 = vpop.permute.xlu0 %416
    %418 = vrot.lane.b32.xlu0 %v396, 24
    %v419 = vpop.permute.xlu0 %418
    %420 = vrot.lane.b32.xlu0 %v405, 24
    %v421 = vpop.permute.xlu0 %420
    %vm422 = vcmask 1045504
    %v423 = vrot.slane %v147, 2
    %v424 = vrot.slane %v155, 2
    %v425 = vsel %vm422, %v423, %v424
    %v426 = vrot.slane %v148, 2
    %v427 = vrot.slane %v156, 2
    %v428 = vsel %vm422, %v426, %v427
    %v429 = vrot.slane %v149, 2
    %v430 = vrot.slane %v157, 2
    %v431 = vsel %vm422, %v429, %v430
    %v432 = vrot.slane %v150, 2
    %v433 = vrot.slane %v158, 2
    %v434 = vsel %vm422, %v432, %v433
    %v435 = vrot.slane %v151, 2
    %v436 = vrot.slane %v159, 2
    %v437 = vsel %vm422, %v435, %v436
    %v438 = vrot.slane %v152, 2
    %v439 = vrot.slane %v160, 2
    %v440 = vsel %vm422, %v438, %v439
    %v441 = vrot.slane %v153, 2
    %v442 = vrot.slane %v161, 2
    %v443 = vsel %vm422, %v441, %v442
    %v444 = vrot.slane %v154, 2
    %v445 = vrot.slane %v162, 2
    %v446 = vsel %vm422, %v444, %v445
    %447 = vrot.lane.b32.xlu0 %v425, 32
    %v448 = vpop.permute.xlu0 %447
    %449 = vrot.lane.b32.xlu0 %v428, 32
    %v450 = vpop.permute.xlu0 %449
    %451 = vrot.lane.b32.xlu0 %v431, 32
    %v452 = vpop.permute.xlu0 %451
    %453 = vrot.lane.b32.xlu0 %v434, 32
    %v454 = vpop.permute.xlu0 %453
    %455 = vrot.lane.b32.xlu0 %v437, 32
    %v456 = vpop.permute.xlu0 %455
    %457 = vrot.lane.b32.xlu0 %v440, 32
    %v458 = vpop.permute.xlu0 %457
    %459 = vrot.lane.b32.xlu0 %v443, 32
    %v460 = vpop.permute.xlu0 %459
    %461 = vrot.lane.b32.xlu0 %v446, 32
    %v462 = vpop.permute.xlu0 %461
    %vm463 = vcmask 64512
    %v465 = vsel %vm463, %v147, %v261
    %v467 = vsel %vm463, %v148, %v263
    %v469 = vsel %vm463, %v149, %v265
    %v471 = vsel %vm463, %v150, %v267
    %v473 = vsel %vm463, %v151, %v269
    %v475 = vsel %vm463, %v152, %v271
    %v477 = vsel %vm463, %v153, %v273
    %v479 = vsel %vm463, %v154, %v275
    %vm480 = vcmask 130048
    %v482 = vsel %vm480, %v465, %v318
    %v484 = vsel %vm480, %v467, %v320
    %v486 = vsel %vm480, %v469, %v322
    %v488 = vsel %vm480, %v471, %v324
    %v490 = vsel %vm480, %v473, %v326
    %v492 = vsel %vm480, %v475, %v328
    %v494 = vsel %vm480, %v477, %v330
    %v496 = vsel %vm480, %v479, %v332
    %vm497 = vcmask 195584
    %v499 = vsel %vm497, %v482, %v407
    %v501 = vsel %vm497, %v484, %v409
    %v503 = vsel %vm497, %v486, %v411
    %v505 = vsel %vm497, %v488, %v413
    %v507 = vsel %vm497, %v490, %v415
    %v509 = vsel %vm497, %v492, %v417
    %v511 = vsel %vm497, %v494, %v419
    %v513 = vsel %vm497, %v496, %v421
    %vm514 = vcmask 261120
    %v516 = vsel %vm514, %v499, %v448
    %v518 = vsel %vm514, %v501, %v450
    %v520 = vsel %vm514, %v503, %v452
    %v522 = vsel %vm514, %v505, %v454
    %v524 = vsel %vm514, %v507, %v456
    %v526 = vsel %vm514, %v509, %v458
    %v528 = vsel %vm514, %v511, %v460
    %v530 = vsel %vm514, %v513, %v462
    %v531 = vld [vmem:[%s1] sm:$0xf]
    %v532 = vld [vmem:[%s1 + $0x4] sm:$0xf]
    %v533 = vld [vmem:[%s1 + $0x8] sm:$0xf]
    %v534 = vld [vmem:[%s1 + $0xc] sm:$0xf]
    %v535 = vld [vmem:[%s1 + $0x10] sm:$0xf]
    %v541 = vunpack.c.l.b16 %v531
    %v542 = vunpack.c.l.b16 %v532
    %v543 = vunpack.c.l.b16 %v533
    %v544 = vunpack.c.l.b16 %v534
    %v545 = vunpack.c.l.b16 %v535
    %v546 = vpack.c.b16 %v542, %v541
    %v547 = vpack.c.b16 %v544, %v543
    %v548 = vpack.c.b16 %v545, %v545
    %vm551 = vcmask 326656
    %v552 = vsel %vm551, %v516, 0
    %v554 = vsel %vm551, %v518, 0
    %v556 = vsel %vm551, %v520, 0
    %v558 = vsel %vm551, %v522, 0
    %v560 = vsel %vm551, %v524, 0
    %v562 = vsel %vm551, %v526, 0
    %v564 = vsel %vm551, %v528, 0
    %v566 = vsel %vm551, %v530, 0
    %vm568 = vcmask 1043456
    %v570 = vsel %vm568, %v548, 0
    %572 = vmatprep.subr.bf16.mxu0 0
    %573 = vmatpush1.bf16.msra.mxu0 %v546
    %574 = vmatprep.subr.bf16.mxu0 0
    %575 = vmatpush1.bf16.msra.mxu0 %v547
    %576 = vmatprep.subr.bf16.mxu0 0
    %577 = vmatpush1.bf16.msra.mxu0 %v570
    %578 = vmatprep.subr.bf16.mxu0 0
    %579 = vmatpush1.bf16.msra.mxu0 0
    %580 = vmatprep.subr.bf16.mxu0 0
    %581 = vmatpush1.bf16.msra.mxu0 0
    %582 = vmatprep.subr.bf16.mxu0 0
    %583 = vmatpush1.bf16.msra.mxu0 0
    %584 = vmatprep.subr.bf16.mxu0 0
    %585 = vmatpush1.bf16.msra.mxu0 0
    %586 = vmatprep.subr.bf16.mxu0 0
    %587 = vmatpush1.bf16.msra.mxu0 0
    %588 = vmatprep.subr.bf16.mxu0 0
    %589 = vmatpush1.bf16.msra.mxu0 0
    %590 = vmatprep.subr.bf16.mxu0 0
    %591 = vmatpush1.bf16.msra.mxu0 0
    %592 = vmatprep.subr.bf16.mxu0 0
    %593 = vmatpush1.bf16.msra.mxu0 0
    %594 = vmatprep.subr.bf16.mxu0 0
    %595 = vmatpush1.bf16.msra.mxu0 0
    %596 = vmatprep.subr.bf16.mxu0 0
    %597 = vmatpush1.bf16.msra.mxu0 0
    %598 = vmatprep.subr.bf16.mxu0 0
    %599 = vmatpush1.bf16.msra.mxu0 0
    %600 = vmatprep.subr.bf16.mxu0 0
    %601 = vmatpush1.bf16.msra.mxu0 0
    %602 = vmatprep.subr.bf16.mxu0 0
    %603 = vmatpush1.bf16.msra.mxu0 0
    %604 = vmatprep.mubr.bf16.mxu0 0
    %605 = vmatmul.mubr.bf16.gmra.mrb[0].mxu0 %v552
    %v606 = vpop.f32.mrb[0].mxu0
    %v607 = vadd.f32 0.0, %v606
    %v608 = vpop.f32.mrb[0].mxu0
    %v609 = vpop.f32.mrb[0].mxu0
    %v610 = vadd.f32 0.0, %v609
    %v611 = vpop.f32.mrb[0].mxu0
    %612 = vmatprep.mubr.bf16.mxu0 0
    %613 = vmatmul.mubr.bf16.gmra.mrb[0].mxu0 %v554
    %v614 = vpop.f32.mrb[0].mxu0
    %v615 = vadd.f32 0.0, %v614
    %v616 = vpop.f32.mrb[0].mxu0
    %v617 = vpop.f32.mrb[0].mxu0
    %v618 = vadd.f32 0.0, %v617
    %v619 = vpop.f32.mrb[0].mxu0
    %620 = vmatprep.mubr.bf16.mxu0 0
    %621 = vmatmul.mubr.bf16.gmra.mrb[0].mxu0 %v556
    %v622 = vpop.f32.mrb[0].mxu0
    %v623 = vadd.f32 0.0, %v622
    %v624 = vpop.f32.mrb[0].mxu0
    %v625 = vpop.f32.mrb[0].mxu0
    %v626 = vadd.f32 0.0, %v625
    %v627 = vpop.f32.mrb[0].mxu0
    %628 = vmatprep.mubr.bf16.mxu0 0
    %629 = vmatmul.mubr.bf16.gmra.mrb[0].mxu0 %v558
    %v630 = vpop.f32.mrb[0].mxu0
    %v631 = vadd.f32 0.0, %v630
    %v632 = vpop.f32.mrb[0].mxu0
    %v633 = vpop.f32.mrb[0].mxu0
    %v634 = vadd.f32 0.0, %v633
    %v635 = vpop.f32.mrb[0].mxu0
    %636 = vmatprep.mubr.bf16.mxu0 0
    %637 = vmatmul.mubr.bf16.gmra.mrb[0].mxu0 %v560
    %v638 = vpop.f32.mrb[0].mxu0
    %v639 = vadd.f32 0.0, %v638
    %v640 = vpop.f32.mrb[0].mxu0
    %v641 = vpop.f32.mrb[0].mxu0
    %v642 = vadd.f32 0.0, %v641
    %v643 = vpop.f32.mrb[0].mxu0
    %644 = vmatprep.mubr.bf16.mxu0 0
    %645 = vmatmul.mubr.bf16.gmra.mrb[0].mxu0 %v562
    %v646 = vpop.f32.mrb[0].mxu0
    %v647 = vadd.f32 0.0, %v646
    %v648 = vpop.f32.mrb[0].mxu0
    %v649 = vpop.f32.mrb[0].mxu0
    %v650 = vadd.f32 0.0, %v649
    %v651 = vpop.f32.mrb[0].mxu0
    %652 = vmatprep.mubr.bf16.mxu0 0
    %653 = vmatmul.mubr.bf16.gmra.mrb[0].mxu0 %v564
    %v654 = vpop.f32.mrb[0].mxu0
    %v655 = vadd.f32 0.0, %v654
    %v656 = vpop.f32.mrb[0].mxu0
    %v657 = vpop.f32.mrb[0].mxu0
    %v658 = vadd.f32 0.0, %v657
    %v659 = vpop.f32.mrb[0].mxu0
    %660 = vmatprep.mubr.bf16.mxu0 0
    %661 = vmatmul.mubr.bf16.gmra.mrb[0].mxu0 %v566
    %v662 = vpop.f32.mrb[0].mxu0
    %v663 = vadd.f32 0.0, %v662
    %v664 = vpop.f32.mrb[0].mxu0
    %v665 = vpop.f32.mrb[0].mxu0
    %v666 = vadd.f32 0.0, %v665
    %v667 = vpop.f32.mrb[0].mxu0
    %668 = vdwg.mxu0
    %v669 = vsel %vm514, %v607, -inf
    %vm670 = vcmask 259072
    %v671 = vsel %vm670, %v610, -inf
    %v672 = vmax.f32 %v669, %v671
    %v673 = vrot.slane %v672, 4
    %v674 = vmax.f32 %v672, %v673
    %v675 = vrot.slane %v674, 2
    %v676 = vmax.f32 %v674, %v675
    %v677 = vrot.slane %v676, 1
    %v678 = vmax.f32 %v676, %v677
    %v679 = vsel %vm514, %v615, -inf
    %v680 = vsel %vm670, %v618, -inf
    %v681 = vmax.f32 %v679, %v680
    %v682 = vrot.slane %v681, 4
    %v683 = vmax.f32 %v681, %v682
    %v684 = vrot.slane %v683, 2
    %v685 = vmax.f32 %v683, %v684
    %v686 = vrot.slane %v685, 1
    %v687 = vmax.f32 %v685, %v686
    %v688 = vsel %vm514, %v623, -inf
    %v689 = vsel %vm670, %v626, -inf
    %v690 = vmax.f32 %v688, %v689
    %v691 = vrot.slane %v690, 4
    %v692 = vmax.f32 %v690, %v691
    %v693 = vrot.slane %v692, 2
    %v694 = vmax.f32 %v692, %v693
    %v695 = vrot.slane %v694, 1
    %v696 = vmax.f32 %v694, %v695
    %v697 = vsel %vm514, %v631, -inf
    %v698 = vsel %vm670, %v634, -inf
    %v699 = vmax.f32 %v697, %v698
    %v700 = vrot.slane %v699, 4
    %v701 = vmax.f32 %v699, %v700
    %v702 = vrot.slane %v701, 2
    %v703 = vmax.f32 %v701, %v702
    %v704 = vrot.slane %v703, 1
    %v705 = vmax.f32 %v703, %v704
    %v706 = vsel %vm514, %v639, -inf
    %v707 = vsel %vm670, %v642, -inf
    %v708 = vmax.f32 %v706, %v707
    %v709 = vrot.slane %v708, 4
    %v710 = vmax.f32 %v708, %v709
    %v711 = vrot.slane %v710, 2
    %v712 = vmax.f32 %v710, %v711
    %v713 = vrot.slane %v712, 1
    %v714 = vmax.f32 %v712, %v713
    %v715 = vsel %vm514, %v647, -inf
    %v716 = vsel %vm670, %v650, -inf
    %v717 = vmax.f32 %v715, %v716
    %v718 = vrot.slane %v717, 4
    %v719 = vmax.f32 %v717, %v718
    %v720 = vrot.slane %v719, 2
    %v721 = vmax.f32 %v719, %v720
    %v722 = vrot.slane %v721, 1
    %v723 = vmax.f32 %v721, %v722
    %v724 = vsel %vm514, %v655, -inf
    %v725 = vsel %vm670, %v658, -inf
    %v726 = vmax.f32 %v724, %v725
    %v727 = vrot.slane %v726, 4
    %v728 = vmax.f32 %v726, %v727
    %v729 = vrot.slane %v728, 2
    %v730 = vmax.f32 %v728, %v729
    %v731 = vrot.slane %v730, 1
    %v732 = vmax.f32 %v730, %v731
    %v733 = vsel %vm514, %v663, -inf
    %v734 = vsel %vm670, %v666, -inf
    %v735 = vmax.f32 %v733, %v734
    %v736 = vrot.slane %v735, 4
    %v737 = vmax.f32 %v735, %v736
    %v738 = vrot.slane %v737, 2
    %v739 = vmax.f32 %v737, %v738
    %v740 = vrot.slane %v739, 1
    %v741 = vmax.f32 %v739, %v740
    %v742 = vld [vmem:[%s2] sm:$0x1]
    %v744 = vlaneseq
    %v745 = vshrl.u32 %v744, 7
    %v746 = vsub.s32 0, %v745
    %v747 = vrot.slane %v742, %v746
    %v749 = vadd.f32 %v678, %v747
    %v750 = vadd.f32 %v687, %v747
    %v751 = vadd.f32 %v696, %v747
    %v752 = vadd.f32 %v705, %v747
    %v753 = vadd.f32 %v714, %v747
    %v754 = vadd.f32 %v723, %v747
    %v755 = vadd.f32 %v732, %v747
    %v756 = vadd.f32 %v741, %v747
    %v757 = vmax.f32 %v749, 0.0
    %v758 = vmax.f32 %v750, 0.0
    %v759 = vmax.f32 %v751, 0.0
    %v760 = vmax.f32 %v752, 0.0
    %v761 = vmax.f32 %v753, 0.0
    %v762 = vmax.f32 %v754, 0.0
    %v763 = vmax.f32 %v755, 0.0
    %v764 = vmax.f32 %v756, 0.0
    %v773 = vrot.slane %v758, 7
    %vm774 = vcmask 1041409
    %v775 = vsel %vm774, %v773, %v757
    %v776 = vrot.slane %v759, 6
    %vm777 = vcmask 1042434
    %v778 = vsel %vm777, %v776, %v775
    %v779 = vrot.slane %v760, 5
    %vm780 = vcmask 1043459
    %v781 = vsel %vm780, %v779, %v778
    %v782 = vrot.slane %v761, 4
    %vm783 = vcmask 1044484
    %v784 = vsel %vm783, %v782, %v781
    %v785 = vrot.slane %v762, 3
    %vm786 = vcmask 1045509
    %v787 = vsel %vm786, %v785, %v784
    %v788 = vrot.slane %v763, 2
    %vm789 = vcmask 1046534
    %v790 = vsel %vm789, %v788, %v787
    %v791 = vrot.slane %v764, 1
    %vm792 = vcmask 1047559
    %v793 = vsel %vm792, %v791, %v790
    %795 = vst.msk [vmem:[#allocation2] sm:$0xff] %vm514, %v793
    // Predicated region
    $region14: #{tpu_custom_call.1} parent=1 // pred_check
      _
    $region15: #{tpu_custom_call.1} parent=1 // pred_check_branch
      %797 = sbr.rel (0) target = $region17
    $region16: #{tpu_custom_call.1} parent=1 // pred_region
      %s799 = ssub.s32 128, 128
      %800 = vsyncadd [#allocation3], %s799
      %s802 = sshll.u32 [#allocation2], 4
      %s803 = int_to_ptr.vmem [resolvable:$true] %s802
      %805 = dma.vmem_to_hbm [thread:$0]  %s803, 128, %s3, [#allocation3]
    $region17: #{tpu_custom_call.1} parent=1 // pred_fallthru
      _
    // Predicated region
    $region18: #{tpu_custom_call.1} parent=1 // pred_check
      _
    $region19: #{tpu_custom_call.1} parent=1 // pred_check_branch
      %807 = sbr.rel (0) target = $region21
    $region20: #{tpu_custom_call.1} parent=1 // pred_region
      %808 = dma.done [#allocation3], 128
    $region21: #{tpu_custom_call.1} parent=1 // pred_fallthru
      _
    %809 = vsyncpa [#allocation3], 1

</llo_original>
